<compile_context>
chip_gen: v7x
topology: tpu7x:2x2x1
jax: 0.10.0
libtpu: 0.0.40
codegen_flags: <defaults>
</compile_context>

<pallas_src>
import functools

import jax
import jax.numpy as jnp
from jax import lax
from jax.experimental import pallas as pl
from jax.experimental.pallas import tpu as pltpu

EPS = 1e-5  # torch.nn.LayerNorm default


def _imageproj_kernel(x_ref, w_ref, b_ref, gamma_ref, beta_ref, o_ref, *, d):
    # x: (tb, E), w: (E, tn), b: (1, tn), gamma/beta: (1, d), o: (tb, tn)
    x = x_ref[...]
    w = w_ref[...]
    if x.dtype != w.dtype:
        x = x.astype(w.dtype)  # bf16 weights -> MXU-native bf16 x bf16, f32 acc
    y = jnp.dot(x, w, preferred_element_type=jnp.float32)
    y = y + b_ref[...].astype(jnp.float32)

    tb, tn = y.shape
    # Hoist gamma/beta broadcasts out of the per-token loop (JAX does not CSE
    # broadcast_in_dim; the static unroll would re-emit one per token).
    g = jnp.broadcast_to(gamma_ref[...].astype(jnp.float32), (tb, d))
    bt = jnp.broadcast_to(beta_ref[...].astype(jnp.float32), (tb, d))

    # Static unroll over tokens in this N tile. Each chunk is a lane-aligned
    # slice (offsets multiples of d), so the per-token LayerNorm is exact and
    # relayout-free.
    for t in range(tn // d):
        chunk = y[:, t * d:(t + 1) * d]                       # (tb, d), f32
        mean = jnp.mean(chunk, axis=-1, keepdims=True)
        c = chunk - mean
        var = jnp.mean(c * c, axis=-1, keepdims=True)
        o_ref[:, t * d:(t + 1) * d] = (
            c * lax.rsqrt(var + EPS) * g + bt).astype(o_ref.dtype)


def prepare_image_proj_params(weight, bias, weight_dtype=jnp.bfloat16):
    """One-time repack at parameter-load time (hoisted out of the forward path).

    weight: torch Linear layout (T*D, E) -> packed (E, T*D), cast to
            `weight_dtype` (bf16 default: kernel is weight-BW bound, so halving
            weight bytes is ~2x wall-clock; matmul still accumulates in f32).
    bias:   (T*D,) -> (1, T*D) in the same dtype.
    Column j of the packed weight corresponds to output index j = t*D + d,
    matching y.reshape(-1, T, D) exactly.
    """
    w_packed = jnp.asarray(weight).T.astype(weight_dtype)          # (E, T*D)
    bias_row = jnp.asarray(bias).reshape(1, -1).astype(weight_dtype)  # (1, T*D)
    return w_packed, bias_row


def _vmem_capacity_bytes():
    try:
        return int(pltpu.get_tpu_info().vmem_capacity_bytes)
    except Exception:
        return 64 << 20  # conservative fallback: v7x physical VMEM per TC


def _tile_bytes(tb, tn, e, d, x_bytes, w_bytes, out_bytes):
    """Complete per-step VMEM footprint (double-buffered operands + live f32 y)."""
    return (2 * e * tn * w_bytes        # weight tile (double-buffered)
            + 2 * tb * e * x_bytes      # x tile
            + 2 * tb * tn * out_bytes   # output tile
            + 2 * tn * w_bytes          # bias tile
            + 2 * 2 * d * 4             # gamma / beta
            + tb * tn * 4)              # live f32 matmul result (vregs/spill)


def _divisors_desc(n, cap):
    return [k for k in range(min(n, cap), 0, -1) if n % k == 0]


def _pick_tiles(b, e, d, t, n, x_bytes, w_bytes, out_bytes, budget):
    """Joint (tb, tn) pick: largest tiles whose full VMEM footprint fits."""
    if b <= 512:
        tb_cands = [b]  # block dim == full dim always satisfies the (8,128) rule
    else:
        # Prefer MXU-aligned (256-multiple) then 8-aligned divisors of B.
        tb_cands = [c for c in (512, 256, 128, 64, 32, 16, 8) if b % c == 0]
        if not tb_cands:
            tb_cands = [b]  # no 8-aligned divisor: take the whole batch

    for tb in tb_cands:
        for tokens in _divisors_desc(t, t):
            tn = tokens * d
            if tn != n and tn % 128 != 0:
                continue  # lane-alignment rule for partial-N blocks
            if _tile_bytes(tb, tn, e, d, x_bytes, w_bytes, out_bytes) <= budget:
                return tb, tn
    # Fallback: smallest legal tiles.
    return tb_cands[-1], (d if d % 128 == 0 else n)


def image_proj_model(image_embeds, w_packed, bias_row, gamma, beta,
                     cross_attention_dim, clip_extra_context_tokens):
    """image_embeds: (B, E); w_packed: (E, T*D); bias_row: (1, T*D).
    Returns (B, T, D)."""
    B, E = image_embeds.shape
    D = cross_attention_dim
    T = clip_extra_context_tokens
    N = T * D
    assert w_packed.shape == (E, N)
    assert bias_row.shape == (1, N)

    gamma2 = jnp.asarray(gamma, jnp.float32).reshape(1, D)
    beta2 = jnp.asarray(beta, jnp.float32).reshape(1, D)

    x_bytes = jnp.dtype(image_embeds.dtype).itemsize
    w_bytes = jnp.dtype(w_packed.dtype).itemsize
    out_bytes = x_bytes

    # Generation-aware VMEM budget + explicit scoped limit (default scoped limit
    # is only 16 MiB on v5e / 32 MiB on v7x).
    capacity = _vmem_capacity_bytes()
    vmem_limit = min(int(capacity * 3 // 4), 112 << 20)
    budget = max(vmem_limit - (2 << 20), 4 << 20)  # headroom for compiler scratch

    tb, tn = _pick_tiles(B, E, D, T, N, x_bytes, w_bytes, out_bytes, budget)

    # Guarantee >=2 parallel grid steps when possible so both TensorCores on a
    # v7x chip stream the weight concurrently (per-step cost ~0.35us, negligible
    # even on single-TC chips).
    if (B // tb) * (N // tn) == 1 and T >= 2:
        for tok in _divisors_desc(T, T // 2):
            if (tok * D) % 128 == 0:
                tn = tok * D
                break

    num_n, num_b = N // tn, B // tb

    kernel = functools.partial(_imageproj_kernel, d=D)

    out = pl.pallas_call(
        kernel,
        out_shape=jax.ShapeDtypeStruct((B, N), image_embeds.dtype),
        # Weight-tile axis (j) is OUTER, batch-tile axis (i) is the inner/fast
        # axis: the weight block index is independent of i, so each weight tile
        # is DMA'd once and stays resident across all batch tiles.
        grid=(num_n, num_b),
        in_specs=[
            pl.BlockSpec((tb, E), lambda j, i: (i, 0)),   # x tile (cheap, per-i)
            pl.BlockSpec((E, tn), lambda j, i: (0, j)),   # fused weight tile
            pl.BlockSpec((1, tn), lambda j, i: (0, j)),   # bias tile
            pl.BlockSpec((1, D), lambda j, i: (0, 0)),    # gamma
            pl.BlockSpec((1, D), lambda j, i: (0, 0)),    # beta
        ],
        out_specs=pl.BlockSpec((tb, tn), lambda j, i: (i, j)),  # lane-dense slab
        compiler_params=pltpu.CompilerParams(
            dimension_semantics=("parallel", "parallel"),
            vmem_limit_bytes=vmem_limit),
    )(image_embeds, w_packed, bias_row, gamma2, beta2)

    # (B, T*D) -> (B, T, D): contiguous reshape, free.
    return out.reshape(B, T, D)


def reference(image_embeds, weight, bias, gamma, beta, D, T):
    y = image_embeds @ weight.T + bias
    y = y.reshape(-1, T, D)
    mean = jnp.mean(y, axis=-1, keepdims=True)
    var = jnp.mean((y - mean) ** 2, axis=-1, keepdims=True)
    return (y - mean) / jnp.sqrt(var + EPS) * gamma + beta


if __name__ == "__main__":
    # Small shapes consistent with the module.
    B = 2      # batch
    E = 256    # clip_embeddings_dim
    D = 128    # cross_attention_dim
    T = 4      # clip_extra_context_tokens

    key = jax.random.PRNGKey(0)
    k_x, k_w, k_b = jax.random.split(key, 3)

    image_embeds = jax.random.normal(k_x, (B, E), dtype=jnp.float32)
    # Deterministic synthetic params in Linear's (out, in) layout.
    weight = jax.random.normal(k_w, (T * D, E), dtype=jnp.float32) * 0.02
    bias = jax.random.normal(k_b, (T * D,), dtype=jnp.float32) * 0.02
    gamma = jnp.ones((D,), dtype=jnp.float32)   # LayerNorm default init
    beta = jnp.zeros((D,), dtype=jnp.float32)

    ref = reference(image_embeds, weight, bias, gamma, beta, D, T)

    # 1) f32-weight path: exact-semantics check vs reference.
    w32, b32 = prepare_image_proj_params(weight, bias, weight_dtype=jnp.float32)
    out32 = jax.block_until_ready(
        image_proj_model(image_embeds, w32, b32, gamma, beta,
                         cross_attention_dim=D, clip_extra_context_tokens=T))
    assert out32.shape == (B, T, D), out32.shape
    assert jnp.allclose(out32, ref, atol=1e-4, rtol=1e-4), "f32 mismatch vs reference"

    # 2) bf16-weight path (default / production: ~2x fewer weight HBM bytes).
    wbf, bbf = prepare_image_proj_params(weight, bias)  # bf16 by default
    outbf = jax.block_until_ready(
        image_proj_model(image_embeds, wbf, bbf, gamma, beta,
                         cross_attention_dim=D, clip_extra_context_tokens=T))
    assert outbf.shape == (B, T, D), outbf.shape
    assert jnp.allclose(outbf.astype(jnp.float32), ref, atol=1e-1, rtol=1e-1), \
        "bf16 mismatch vs reference"

    print("KERNEL_OK")
</pallas_src>

<mosaic_0001>
module attributes {stable_mosaic.version = 11 : i64} {
  func.func @_imageproj_kernel(%arg0: i32, %arg1: i32, %arg2: memref<2x256xf32, #tpu.memory_space<vmem>>, %arg3: memref<256x256xf32, #tpu.memory_space<vmem>>, %arg4: memref<1x256xf32, #tpu.memory_space<vmem>>, %arg5: memref<1x128xf32, #tpu.memory_space<vmem>>, %arg6: memref<1x128xf32, #tpu.memory_space<vmem>>, %arg7: memref<2x256xf32, #tpu.memory_space<vmem>>) attributes {dimension_semantics = [#tpu.dimension_semantics<parallel>, #tpu.dimension_semantics<parallel>], iteration_bounds = array<i64: 2, 1>, scalar_prefetch = 0 : i64, scratch_operands = 0 : i64, tpu.core_type = #tpu.core_type<tc>, window_params = [{transform_indices = @transform_0, window_bounds = array<i64: 2, 256>}, {transform_indices = @transform_1, window_bounds = array<i64: 256, 256>}, {transform_indices = @transform_2, window_bounds = array<i64: 1, 256>}, {pipeline_mode = #tpu.pipeline_mode<synchronous>, transform_indices = @transform_3, window_bounds = array<i64: 1, 128>}, {pipeline_mode = #tpu.pipeline_mode<synchronous>, transform_indices = @transform_4, window_bounds = array<i64: 1, 128>}, {transform_indices = @transform_5, window_bounds = array<i64: 2, 256>}]} {
    %c0 = arith.constant 0 : index
    %c0_0 = arith.constant 0 : index
    %0 = vector.load %arg2[%c0, %c0_0] : memref<2x256xf32, #tpu.memory_space<vmem>>, vector<2x256xf32>
    %c0_1 = arith.constant 0 : index
    %c0_2 = arith.constant 0 : index
    %1 = vector.load %arg3[%c0_1, %c0_2] : memref<256x256xf32, #tpu.memory_space<vmem>>, vector<256x256xf32>
    %cst = arith.constant dense<0.000000e+00> : vector<2x256xf32>
    %2 = tpu.matmul %0, %1, %cst {dimension_numbers = #tpu.dot_dimension_numbers<[1], [0], [0], [1], [0, 0, 1, 1], [], []>} : vector<2x256xf32>, vector<256x256xf32>, vector<2x256xf32> -> vector<2x256xf32>
    %c0_3 = arith.constant 0 : index
    %c0_4 = arith.constant 0 : index
    %3 = vector.load %arg4[%c0_3, %c0_4] : memref<1x256xf32, #tpu.memory_space<vmem>>, vector<1x256xf32>
    %4 = vector.broadcast %3 : vector<1x256xf32> to vector<2x256xf32>
    %5 = arith.addf %2, %4 : vector<2x256xf32>
    %c0_5 = arith.constant 0 : index
    %c0_6 = arith.constant 0 : index
    %6 = vector.load %arg5[%c0_5, %c0_6] : memref<1x128xf32, #tpu.memory_space<vmem>>, vector<1x128xf32>
    %7 = vector.shape_cast %6 : vector<1x128xf32> to vector<1x128xf32>
    %8 = vector.broadcast %7 : vector<1x128xf32> to vector<2x128xf32>
    %c0_7 = arith.constant 0 : index
    %c0_8 = arith.constant 0 : index
    %9 = vector.load %arg6[%c0_7, %c0_8] : memref<1x128xf32, #tpu.memory_space<vmem>>, vector<1x128xf32>
    %10 = vector.shape_cast %9 : vector<1x128xf32> to vector<1x128xf32>
    %11 = vector.broadcast %10 : vector<1x128xf32> to vector<2x128xf32>
    %12 = vector.extract_strided_slice %5 {offsets = [0, 0], sizes = [2, 128], strides = [1, 1]} : vector<2x256xf32> to vector<2x128xf32>
    %cst_9 = arith.constant dense<0.000000e+00> : vector<2xf32>
    %13 = vector.multi_reduction <add>, %12, %cst_9 [1] : vector<2x128xf32> to vector<2xf32>
    %14 = vector.shape_cast %13 : vector<2xf32> to vector<2x1xf32>
    %cst_10 = arith.constant 1.280000e+02 : f32
    %15 = vector.broadcast %cst_10 : f32 to vector<2x1xf32>
    %16 = arith.divf %14, %15 : vector<2x1xf32>
    %17 = vector.broadcast %16 : vector<2x1xf32> to vector<2x128xf32>
    %18 = arith.subf %12, %17 : vector<2x128xf32>
    %19 = arith.mulf %18, %18 : vector<2x128xf32>
    %cst_11 = arith.constant dense<0.000000e+00> : vector<2xf32>
    %20 = vector.multi_reduction <add>, %19, %cst_11 [1] : vector<2x128xf32> to vector<2xf32>
    %21 = vector.shape_cast %20 : vector<2xf32> to vector<2x1xf32>
    %cst_12 = arith.constant 1.280000e+02 : f32
    %22 = vector.broadcast %cst_12 : f32 to vector<2x1xf32>
    %23 = arith.divf %21, %22 : vector<2x1xf32>
    %cst_13 = arith.constant 9.99999974E-6 : f32
    %24 = vector.broadcast %cst_13 : f32 to vector<2x1xf32>
    %25 = arith.addf %23, %24 : vector<2x1xf32>
    %26 = math.rsqrt %25 : vector<2x1xf32>
    %27 = vector.broadcast %26 : vector<2x1xf32> to vector<2x128xf32>
    %28 = arith.mulf %18, %27 : vector<2x128xf32>
    %29 = arith.mulf %28, %8 : vector<2x128xf32>
    %30 = arith.addf %29, %11 : vector<2x128xf32>
    %c0_14 = arith.constant 0 : index
    %c0_15 = arith.constant 0 : index
    %31 = vector.load %arg7[%c0_14, %c0_15] : memref<2x256xf32, #tpu.memory_space<vmem>>, vector<2x128xf32>
    tpu.vector_store %arg7[%c0_14, %c0_15], %30 {strides = array<i32>} : memref<2x256xf32, #tpu.memory_space<vmem>>, vector<2x128xf32>,
    %32 = vector.extract_strided_slice %5 {offsets = [0, 128], sizes = [2, 128], strides = [1, 1]} : vector<2x256xf32> to vector<2x128xf32>
    %cst_16 = arith.constant dense<0.000000e+00> : vector<2xf32>
    %33 = vector.multi_reduction <add>, %32, %cst_16 [1] : vector<2x128xf32> to vector<2xf32>
    %34 = vector.shape_cast %33 : vector<2xf32> to vector<2x1xf32>
    %cst_17 = arith.constant 1.280000e+02 : f32
    %35 = vector.broadcast %cst_17 : f32 to vector<2x1xf32>
    %36 = arith.divf %34, %35 : vector<2x1xf32>
    %37 = vector.broadcast %36 : vector<2x1xf32> to vector<2x128xf32>
    %38 = arith.subf %32, %37 : vector<2x128xf32>
    %39 = arith.mulf %38, %38 : vector<2x128xf32>
    %cst_18 = arith.constant dense<0.000000e+00> : vector<2xf32>
    %40 = vector.multi_reduction <add>, %39, %cst_18 [1] : vector<2x128xf32> to vector<2xf32>
    %41 = vector.shape_cast %40 : vector<2xf32> to vector<2x1xf32>
    %cst_19 = arith.constant 1.280000e+02 : f32
    %42 = vector.broadcast %cst_19 : f32 to vector<2x1xf32>
    %43 = arith.divf %41, %42 : vector<2x1xf32>
    %cst_20 = arith.constant 9.99999974E-6 : f32
    %44 = vector.broadcast %cst_20 : f32 to vector<2x1xf32>
    %45 = arith.addf %43, %44 : vector<2x1xf32>
    %46 = math.rsqrt %45 : vector<2x1xf32>
    %47 = vector.broadcast %46 : vector<2x1xf32> to vector<2x128xf32>
    %48 = arith.mulf %38, %47 : vector<2x128xf32>
    %49 = arith.mulf %48, %8 : vector<2x128xf32>
    %50 = arith.addf %49, %11 : vector<2x128xf32>
    %c0_21 = arith.constant 0 : index
    %c128 = arith.constant 128 : index
    %51 = vector.load %arg7[%c0_21, %c128] : memref<2x256xf32, #tpu.memory_space<vmem>>, vector<2x128xf32>
    tpu.vector_store %arg7[%c0_21, %c128], %50 {strides = array<i32>} : memref<2x256xf32, #tpu.memory_space<vmem>>, vector<2x128xf32>,
    return
  }
  func.func @transform_0(%arg0: i32, %arg1: i32) -> (i32, i32) {
    %c0_i32 = arith.constant 0 : i32
    %c0_i32_0 = arith.constant 0 : i32
    return %arg1, %c0_i32 : i32, i32
  }
  func.func @transform_1(%arg0: i32, %arg1: i32) -> (i32, i32) {
    %c0_i32 = arith.constant 0 : i32
    %c0_i32_0 = arith.constant 0 : i32
    return %c0_i32, %arg0 : i32, i32
  }
  func.func @transform_2(%arg0: i32, %arg1: i32) -> (i32, i32) {
    %c0_i32 = arith.constant 0 : i32
    %c0_i32_0 = arith.constant 0 : i32
    return %c0_i32, %arg0 : i32, i32
  }
  func.func @transform_3(%arg0: i32, %arg1: i32) -> (i32, i32) {
    %c0_i32 = arith.constant 0 : i32
    %c0_i32_0 = arith.constant 0 : i32
    %c0_i32_1 = arith.constant 0 : i32
    return %c0_i32, %c0_i32_0 : i32, i32
  }
  func.func @transform_4(%arg0: i32, %arg1: i32) -> (i32, i32) {
    %c0_i32 = arith.constant 0 : i32
    %c0_i32_0 = arith.constant 0 : i32
    %c0_i32_1 = arith.constant 0 : i32
    return %c0_i32, %c0_i32_0 : i32, i32
  }
  func.func @transform_5(%arg0: i32, %arg1: i32) -> (i32, i32) {
    %c0_i32 = arith.constant 0 : i32
    return %arg1, %arg0 : i32, i32
  }
}

</mosaic_0001>

<llo_original>
// kernel: tpu_custom_call.1
$region0: #{tpu_custom_call.1}
  #allocation0 [shape = 'u32[]', space=smem, size = 0x4, offset = 0x4, fixed_abs, tag = 'smem constant byte address 0x4 - core index']
  #allocation1 [shape = 'u32[144,128]{1,0:T(1,128)}', space=vmem, size = 0x12000, scoped, tag = 'internal scratch']
  %s0 = inlined_call_operand.hbm [shape: f32[2,256], index: 0, kind: input, shape index: {}]
  %s1 = inlined_call_operand.hbm [shape: f32[256,512], index: 1, kind: input, shape index: {}]
  %s2 = inlined_call_operand.vmem [shape: f32[1,512], index: 2, kind: input, shape index: {}]
  %s3 = inlined_call_operand.vmem [shape: f32[1,128], index: 3, kind: input, shape index: {}]
  %s4 = inlined_call_operand.vmem [shape: f32[1,128], index: 4, kind: input, shape index: {}]
  %s5 = inlined_call_operand.hbm [shape: f32[2,512], index: 5, kind: output, shape index: {}]
  %s6 = sld [smem:[#allocation0]]
  $region61: #{tpu_custom_call.1} parent=0
    _
  %s8 = ssub.s32 1, %s6
  %s9 = scalar_select 0, %s8, %s6
  $region1: #{tpu_custom_call.1} parent=0
    #allocation2 [shape = 'u8[2048]{0}', space=vmem, size = 0x800, scoped, tag = 'input window, operand 0, single buffered']
    #allocation3 [shape = 's32[2]{0}', space=sflag, size = 0x8, scoped, tag = 'scoped memory for tpu_custom_call.1']
    #allocation4 [shape = 's32[2]{0}', space=sflag, size = 0x8, scoped, tag = 'scoped memory for tpu_custom_call.1']
    #allocation5 [shape = 'u8[524288]{0}', space=vmem, size = 0x80000, scoped, tag = 'input window, operand 1']
    #allocation6 [shape = 's32[2]{0}', space=sflag, size = 0x8, scoped, tag = 'scoped memory for tpu_custom_call.1']
    #allocation7 [shape = 'u8[4096]{0}', space=vmem, size = 0x1000, scoped, tag = 'output window, operand 0']
    %10 = vsyncpa [#allocation3], 0
    %11 = vsyncpa [#allocation6], 0
    %s12 = scalar_lea.sflag [#allocation6], 1
    %13 = vsyncpa %s12, 0
    %14 = vsyncpa [#allocation4], 0
    %s15 = scalar_lea.sflag [#allocation4], 1
    %16 = vsyncpa %s15, 0
    loop: start=0, step=1, limit=4
    $region2: #{tpu_custom_call.1} parent=1 // loop_pre_header
      _
    $region3: #{tpu_custom_call.1} parent=1 // loop_header
      %s18 = sphi 0, %s22
      %p19 = scmp.ge.s32.totalorder %s18, 4
      %s25 = sphi 0, %s37
      %s26 = sphi 0, %s33
      %s27 = sphi 0, %s25
      %s28 = sphi 0, %s26
      %s29 = sphi 0, %s27
      %s30 = sphi 0, %s28
      %s40 = sphi 0, %s42
      %s43 = sphi 0, %s40
      %s44 = sphi 0, %s43
      %s60 = sphi 0, %s44
      %s66 = sphi 0, %s68
      %s69 = sphi 0, %s66
      %s70 = sphi 0, %s69
      %s86 = sphi 0, %s70
      %s92 = sphi 0, %s94
      %s95 = sphi 0, %s92
      %s96 = sphi 0, %s95
      %s112 = sphi 0, %s96
      %s116 = sphi 0, %s116
      %s118 = sphi 0, %s116
      %s119 = sphi 0, %s118
      %s133 = sphi 0, %s119
      %s137 = sphi 0, %s137
      %s139 = sphi 0, %s137
      %s140 = sphi 0, %s139
      %s154 = sphi 0, %s140
      %s162 = sphi 0, %s164
      %s165 = sphi 0, %s162
      %s166 = sphi 0, %s165
      %s182 = sphi 0, %s166
    $region4: #{tpu_custom_call.1} parent=1 // loop_header_branch
      %21 = sbr.rel (%p19) target = $region8
    $region5: #{tpu_custom_call.1} parent=1 // loop_body
      %s23 = ssub.s32 %s18, 1
      %s24 = ssub.s32 %s18, 2
      %s31 = sadd.s32 1, %s26
      %p32 = scmp.ge.s32.totalorder %s31, 1
      %s33 = scalar_select %p32, 0, %s31
      %s34 = sadd.s32 1, %s25
      %s35 = scalar_select %p32, %s34, %s25
      %p36 = scmp.ge.s32.totalorder %s35, 2
      %s37 = scalar_select %p36, 0, %s35
      %s38 = ssub.s32 %s26, %s33
      %p39 = scmp.eq.s32.totalorder %s38, 0
      %s41 = sadd.s32 %s40, 1
      %s42 = scalar_select %p39, %s40, %s41
      %p45 = pneg %p39
      %p46 = scmp.eq.s32.totalorder %s18, 1
      %p47 = por %p45, %p46
      %p48 = scmp.ne.s32.totalorder %s40, %s43
      %p49 = scmp.eq.s32.totalorder %s18, 0
      %p50 = por %p48, %p49
      %p51 = scmp.ne.s32.totalorder %s40, %s43
      %p52 = scmp.eq.s32.totalorder %s23, 1
      %p53 = por %p51, %p52
      %p54 = scmp.ne.s32.totalorder %s43, %s44
      %p55 = scmp.eq.s32.totalorder %s23, 0
      %p56 = por %p54, %p55
      %p57 = scmp.ne.s32.totalorder %s43, %s44
      %p58 = scmp.eq.s32.totalorder %s24, 1
      %p59 = por %p57, %p58
      %p61 = scmp.ne.s32.totalorder %s44, %s60
      %p62 = scmp.eq.s32.totalorder %s24, 0
      %p63 = por %p61, %p62
      %s64 = ssub.s32 %s25, %s37
      %p65 = scmp.eq.s32.totalorder %s64, 0
      %s67 = sadd.s32 %s66, 1
      %s68 = scalar_select %p65, %s66, %s67
      %p71 = pneg %p65
      %p72 = scmp.eq.s32.totalorder %s18, 1
      %p73 = por %p71, %p72
      %p74 = scmp.ne.s32.totalorder %s66, %s69
      %p75 = scmp.eq.s32.totalorder %s18, 0
      %p76 = por %p74, %p75
      %p77 = scmp.ne.s32.totalorder %s66, %s69
      %p78 = scmp.eq.s32.totalorder %s23, 1
      %p79 = por %p77, %p78
      %p80 = scmp.ne.s32.totalorder %s69, %s70
      %p81 = scmp.eq.s32.totalorder %s23, 0
      %p82 = por %p80, %p81
      %p83 = scmp.ne.s32.totalorder %s69, %s70
      %p84 = scmp.eq.s32.totalorder %s24, 1
      %p85 = por %p83, %p84
      %p87 = scmp.ne.s32.totalorder %s70, %s86
      %p88 = scmp.eq.s32.totalorder %s24, 0
      %p89 = por %p87, %p88
      %s90 = ssub.s32 %s25, %s37
      %p91 = scmp.eq.s32.totalorder %s90, 0
      %s93 = sadd.s32 %s92, 1
      %s94 = scalar_select %p91, %s92, %s93
      %p97 = pneg %p91
      %p98 = scmp.eq.s32.totalorder %s18, 1
      %p99 = por %p97, %p98
      %p100 = scmp.ne.s32.totalorder %s92, %s95
      %p101 = scmp.eq.s32.totalorder %s18, 0
      %p102 = por %p100, %p101
      %p103 = scmp.ne.s32.totalorder %s92, %s95
      %p104 = scmp.eq.s32.totalorder %s23, 1
      %p105 = por %p103, %p104
      %p106 = scmp.ne.s32.totalorder %s95, %s96
      %p107 = scmp.eq.s32.totalorder %s23, 0
      %p108 = por %p106, %p107
      %p109 = scmp.ne.s32.totalorder %s95, %s96
      %p110 = scmp.eq.s32.totalorder %s24, 1
      %p111 = por %p109, %p110
      %p113 = scmp.ne.s32.totalorder %s96, %s112
      %p114 = scmp.eq.s32.totalorder %s24, 0
      %p115 = por %p113, %p114
      %s117 = sadd.s32 %s116, 1
      %p120 = scmp.eq.s32.totalorder %s18, 1
      %p121 = scmp.ne.s32.totalorder %s116, %s118
      %p122 = scmp.eq.s32.totalorder %s18, 0
      %p123 = por %p121, %p122
      %p124 = scmp.ne.s32.totalorder %s116, %s118
      %p125 = scmp.eq.s32.totalorder %s23, 1
      %p126 = por %p124, %p125
      %p127 = scmp.ne.s32.totalorder %s118, %s119
      %p128 = scmp.eq.s32.totalorder %s23, 0
      %p129 = por %p127, %p128
      %p130 = scmp.ne.s32.totalorder %s118, %s119
      %p131 = scmp.eq.s32.totalorder %s24, 1
      %p132 = por %p130, %p131
      %p134 = scmp.ne.s32.totalorder %s119, %s133
      %p135 = scmp.eq.s32.totalorder %s24, 0
      %p136 = por %p134, %p135
      %s138 = sadd.s32 %s137, 1
      %p141 = scmp.eq.s32.totalorder %s18, 1
      %p142 = scmp.ne.s32.totalorder %s137, %s139
      %p143 = scmp.eq.s32.totalorder %s18, 0
      %p144 = por %p142, %p143
      %p145 = scmp.ne.s32.totalorder %s137, %s139
      %p146 = scmp.eq.s32.totalorder %s23, 1
      %p147 = por %p145, %p146
      %p148 = scmp.ne.s32.totalorder %s139, %s140
      %p149 = scmp.eq.s32.totalorder %s23, 0
      %p150 = por %p148, %p149
      %p151 = scmp.ne.s32.totalorder %s139, %s140
      %p152 = scmp.eq.s32.totalorder %s24, 1
      %p153 = por %p151, %p152
      %p155 = scmp.ne.s32.totalorder %s140, %s154
      %p156 = scmp.eq.s32.totalorder %s24, 0
      %p157 = por %p155, %p156
      %s158 = ssub.s32 %s26, %s33
      %s159 = ssub.s32 %s25, %s37
      %s160 = sor.u32 %s158, %s159
      %p161 = scmp.eq.s32.totalorder %s160, 0
      %s163 = sadd.s32 %s162, 1
      %s164 = scalar_select %p161, %s162, %s163
      %p167 = pneg %p161
      %p168 = scmp.eq.s32.totalorder %s18, 1
      %p169 = por %p167, %p168
      %p170 = scmp.ne.s32.totalorder %s162, %s165
      %p171 = scmp.eq.s32.totalorder %s18, 0
      %p172 = por %p170, %p171
      %p173 = scmp.ne.s32.totalorder %s162, %s165
      %p174 = scmp.eq.s32.totalorder %s23, 1
      %p175 = por %p173, %p174
      %p176 = scmp.ne.s32.totalorder %s165, %s166
      %p177 = scmp.eq.s32.totalorder %s23, 0
      %p178 = por %p176, %p177
      %p179 = scmp.ne.s32.totalorder %s165, %s166
      %p180 = scmp.eq.s32.totalorder %s24, 1
      %p181 = por %p179, %p180
      %p183 = scmp.ne.s32.totalorder %s166, %s182
      %p184 = scmp.eq.s32.totalorder %s24, 0
      %p185 = por %p183, %p184
      %p186 = scmp.le.s32.totalorder 1, %s18
      %p187 = scmp.lt.s32.totalorder %s18, 3
      %p188 = pnand %p186, %p187
      %p189 = pneg %p188
      // Predicated region
      $region9: #{tpu_custom_call.1} parent=5 // pred_check
        _
      $region10: #{tpu_custom_call.1} parent=5 // pred_check_branch
        %191 = sbr.rel (%p188) target = $region12
      $region11: #{tpu_custom_call.1} parent=5 // pred_region
        %s192 = ssub.s32 %s18, 1
        // Predicated region
        $region13: #{tpu_custom_call.1} parent=11 // pred_check
          %p193 = pneg %p56
        $region14: #{tpu_custom_call.1} parent=11 // pred_check_branch
          %195 = sbr.rel (%p193) target = $region16
        $region15: #{tpu_custom_call.1} parent=11 // pred_region
          %s197 = ssub.s32 64, 64
          %198 = vsyncadd [#allocation3], %s197
          %s199 = smul.addr %s28, 2
          %s200 = smul.addr %s199, 32
          %s201 = scalar_lea.hbm %s0, %s200
          %s203 = sshll.u32 [#allocation2], 4
          %s204 = int_to_ptr.vmem [resolvable:$true] %s203
          %206 = dma.hbm_to_vmem [thread:$0]  %s201, 64, %s204, [#allocation3]
        $region16: #{tpu_custom_call.1} parent=11 // pred_fallthru
          _
        // Predicated region
        $region17: #{tpu_custom_call.1} parent=11 // pred_check
          %p207 = pneg %p129
        $region18: #{tpu_custom_call.1} parent=11 // pred_check_branch
          %209 = sbr.rel (%p207) target = $region20
        $region19: #{tpu_custom_call.1} parent=11 // pred_region
          _
        $region20: #{tpu_custom_call.1} parent=11 // pred_fallthru
          _
        // Predicated region
        $region21: #{tpu_custom_call.1} parent=11 // pred_check
          %p210 = pneg %p150
        $region22: #{tpu_custom_call.1} parent=11 // pred_check_branch
          %212 = sbr.rel (%p210) target = $region24
        $region23: #{tpu_custom_call.1} parent=11 // pred_region
          _
        $region24: #{tpu_custom_call.1} parent=11 // pred_fallthru
          _
      $region12: #{tpu_custom_call.1} parent=5 // pred_fallthru
        _
      %p213 = scmp.lt.s32.totalorder %s18, 2
      // Predicated region
      $region25: #{tpu_custom_call.1} parent=5 // pred_check
        %p214 = pneg %p213
      $region26: #{tpu_custom_call.1} parent=5 // pred_check_branch
        %216 = sbr.rel (%p214) target = $region28
      $region27: #{tpu_custom_call.1} parent=5 // pred_region
        // Predicated region
        $region29: #{tpu_custom_call.1} parent=27 // pred_check
          %p217 = pneg %p76
        $region30: #{tpu_custom_call.1} parent=27 // pred_check_branch
          %219 = sbr.rel (%p217) target = $region32
        $region31: #{tpu_custom_call.1} parent=27 // pred_region
          %s220 = sand.u32 %s66, 1
          %s221 = scalar_lea.sflag [#allocation6], %s220
          %s222 = sand.u32 %s66, 1
          %s223 = smul.addr %s222, 512
          %s224 = scalar_lea.vmem [#allocation5], %s223
          %s225 = smul.u32 2, %s25
          %s227 = ssub.s32 8192, 8192
          %228 = vsyncadd %s221, %s227
          %s229 = smul.addr %s225, 128
          %s230 = scalar_lea.hbm %s1, %s229
          %s231 = sshll.u32 %s224, 4
          %s232 = int_to_ptr.vmem [resolvable:$true] %s231
          %237 = dma.hbm_to_vmem [thread:$0]  %s230, 8192, %s232, %s221, 512, 256, 16
        $region32: #{tpu_custom_call.1} parent=27 // pred_fallthru
          _
        // Predicated region
        $region33: #{tpu_custom_call.1} parent=27 // pred_check
          %p238 = pneg %p102
        $region34: #{tpu_custom_call.1} parent=27 // pred_check_branch
          %240 = sbr.rel (%p238) target = $region36
        $region35: #{tpu_custom_call.1} parent=27 // pred_region
          %s241 = smul.u32 2, %s25
          %p242 = scmp.lt.s32.totalorder %s241, 3
          %s243 = scalar_select %p242, %s241, 3
          %s244 = scalar_lea.vmem %s2, %s243
          %s245 = smul.u32 2, %s25
        $region36: #{tpu_custom_call.1} parent=27 // pred_fallthru
          _
      $region28: #{tpu_custom_call.1} parent=5 // pred_fallthru
        _
      %p246 = scmp.le.s32.totalorder 1, %s18
      %p247 = scmp.lt.s32.totalorder %s18, 3
      %p248 = pnand %p246, %p247
      %p249 = pneg %p248
      // Predicated region
      $region37: #{tpu_custom_call.1} parent=5 // pred_check
        _
      $region38: #{tpu_custom_call.1} parent=5 // pred_check_branch
        %251 = sbr.rel (%p248) target = $region40
      $region39: #{tpu_custom_call.1} parent=5 // pred_region
        %s252 = ssub.s32 %s18, 1
        // Predicated region
        $region41: #{tpu_custom_call.1} parent=39 // pred_check
          %p253 = pneg %p56
        $region42: #{tpu_custom_call.1} parent=39 // pred_check_branch
          %255 = sbr.rel (%p253) target = $region44
        $region43: #{tpu_custom_call.1} parent=39 // pred_region
          %256 = dma.done [#allocation3], 64
        $region44: #{tpu_custom_call.1} parent=39 // pred_fallthru
          _
        %s257 = sand.u32 %s69, 1
        %s258 = scalar_lea.sflag [#allocation6], %s257
        %s259 = sand.u32 %s69, 1
        %s260 = smul.addr %s259, 512
        %s261 = scalar_lea.vmem [#allocation5], %s260
        // Predicated region
        $region45: #{tpu_custom_call.1} parent=39 // pred_check
          %p262 = pneg %p82
        $region46: #{tpu_custom_call.1} parent=39 // pred_check_branch
          %264 = sbr.rel (%p262) target = $region48
        $region47: #{tpu_custom_call.1} parent=39 // pred_region
          %265 = dma.done %s258, 8192
        $region48: #{tpu_custom_call.1} parent=39 // pred_fallthru
          _
        %p266 = pneg %p56
        %p267 = pneg %p53
        %s268 = sand.u32 %s69, 1
        %s269 = scalar_lea.sflag [#allocation6], %s268
        %s270 = sand.u32 %s69, 1
        %s271 = smul.addr %s270, 512
        %s272 = scalar_lea.vmem [#allocation5], %s271
        %p273 = pneg %p82
        %p274 = pneg %p79
        %s275 = smul.u32 2, %s27
        %p276 = scmp.lt.s32.totalorder %s275, 3
        %s277 = scalar_select %p276, %s275, 3
        %s278 = scalar_lea.vmem %s2, %s277
        %p279 = pneg %p108
        %p280 = pneg %p105
        %p281 = pneg %p129
        %p282 = pneg %p126
        %p283 = pneg %p150
        %p284 = pneg %p147
        %p285 = pneg %p178
        %p286 = pneg %p175
        %s287 = sand.u32 %s165, 1
        %s288 = scalar_lea.sflag [#allocation4], %s287
        %s289 = sand.u32 %s165, 1
        %s290 = smul.addr %s289, 4
        %s291 = scalar_lea.vmem [#allocation7], %s290
        %s292 = smul.u32 2, %s27
        %s293 = smul.u32 2, %s27
        %p294 = scmp.lt.s32.totalorder %s293, 3
        %s295 = scalar_select %p294, %s293, 3
        %s296 = scalar_lea.vmem %s2, %s295
        %s297 = smul.u32 2, %s27
        %s298 = smul.u32 2, %s27
        %v299 = vld [vmem:[#allocation2] sm:$0xf]
        %v300 = vld [vmem:[%s261] sm:$0xff]
        %v301 = vld [vmem:[%s261 + $0x8] sm:$0xff]
        %v302 = vld [vmem:[%s261 + $0x10] sm:$0xff]
        %v303 = vld [vmem:[%s261 + $0x18] sm:$0xff]
        %v304 = vld [vmem:[%s261 + $0x20] sm:$0xff]
        %v305 = vld [vmem:[%s261 + $0x28] sm:$0xff]
        %v306 = vld [vmem:[%s261 + $0x30] sm:$0xff]
        %v307 = vld [vmem:[%s261 + $0x38] sm:$0xff]
        %v308 = vld [vmem:[%s261 + $0x40] sm:$0xff]
        %v309 = vld [vmem:[%s261 + $0x48] sm:$0xff]
        %v310 = vld [vmem:[%s261 + $0x50] sm:$0xff]
        %v311 = vld [vmem:[%s261 + $0x58] sm:$0xff]
        %v312 = vld [vmem:[%s261 + $0x60] sm:$0xff]
        %v313 = vld [vmem:[%s261 + $0x68] sm:$0xff]
        %v314 = vld [vmem:[%s261 + $0x70] sm:$0xff]
        %v315 = vld [vmem:[%s261 + $0x78] sm:$0xff]
        %v316 = vld [vmem:[%s261 + $0x80] sm:$0xff]
        %v317 = vld [vmem:[%s261 + $0x88] sm:$0xff]
        %v318 = vld [vmem:[%s261 + $0x90] sm:$0xff]
        %v319 = vld [vmem:[%s261 + $0x98] sm:$0xff]
        %v320 = vld [vmem:[%s261 + $0xa0] sm:$0xff]
        %v321 = vld [vmem:[%s261 + $0xa8] sm:$0xff]
        %v322 = vld [vmem:[%s261 + $0xb0] sm:$0xff]
        %v323 = vld [vmem:[%s261 + $0xb8] sm:$0xff]
        %v324 = vld [vmem:[%s261 + $0xc0] sm:$0xff]
        %v325 = vld [vmem:[%s261 + $0xc8] sm:$0xff]
        %v326 = vld [vmem:[%s261 + $0xd0] sm:$0xff]
        %v327 = vld [vmem:[%s261 + $0xd8] sm:$0xff]
        %v328 = vld [vmem:[%s261 + $0xe0] sm:$0xff]
        %v329 = vld [vmem:[%s261 + $0xe8] sm:$0xff]
        %v330 = vld [vmem:[%s261 + $0xf0] sm:$0xff]
        %v331 = vld [vmem:[%s261 + $0xf8] sm:$0xff]
        %v332 = vld [vmem:[%s261 + $0x100] sm:$0xff]
        %v333 = vld [vmem:[%s261 + $0x108] sm:$0xff]
        %v334 = vld [vmem:[%s261 + $0x110] sm:$0xff]
        %v335 = vld [vmem:[%s261 + $0x118] sm:$0xff]
        %v336 = vld [vmem:[%s261 + $0x120] sm:$0xff]
        %v337 = vld [vmem:[%s261 + $0x128] sm:$0xff]
        %v338 = vld [vmem:[%s261 + $0x130] sm:$0xff]
        %v339 = vld [vmem:[%s261 + $0x138] sm:$0xff]
        %v340 = vld [vmem:[%s261 + $0x140] sm:$0xff]
        %v341 = vld [vmem:[%s261 + $0x148] sm:$0xff]
        %v342 = vld [vmem:[%s261 + $0x150] sm:$0xff]
        %v343 = vld [vmem:[%s261 + $0x158] sm:$0xff]
        %v344 = vld [vmem:[%s261 + $0x160] sm:$0xff]
        %v345 = vld [vmem:[%s261 + $0x168] sm:$0xff]
        %v346 = vld [vmem:[%s261 + $0x170] sm:$0xff]
        %v347 = vld [vmem:[%s261 + $0x178] sm:$0xff]
        %v348 = vld [vmem:[%s261 + $0x180] sm:$0xff]
        %v349 = vld [vmem:[%s261 + $0x188] sm:$0xff]
        %v350 = vld [vmem:[%s261 + $0x190] sm:$0xff]
        %v351 = vld [vmem:[%s261 + $0x198] sm:$0xff]
        %v352 = vld [vmem:[%s261 + $0x1a0] sm:$0xff]
        %v353 = vld [vmem:[%s261 + $0x1a8] sm:$0xff]
        %v354 = vld [vmem:[%s261 + $0x1b0] sm:$0xff]
        %v355 = vld [vmem:[%s261 + $0x1b8] sm:$0xff]
        %v356 = vld [vmem:[%s261 + $0x1c0] sm:$0xff]
        %v357 = vld [vmem:[%s261 + $0x1c8] sm:$0xff]
        %v358 = vld [vmem:[%s261 + $0x1d0] sm:$0xff]
        %v359 = vld [vmem:[%s261 + $0x1d8] sm:$0xff]
        %v360 = vld [vmem:[%s261 + $0x1e0] sm:$0xff]
        %v361 = vld [vmem:[%s261 + $0x1e8] sm:$0xff]
        %v362 = vld [vmem:[%s261 + $0x1f0] sm:$0xff]
        %v363 = vld [vmem:[%s261 + $0x1f8] sm:$0xff]
        %v364 = vld [vmem:[%s296] sm:$0x3]
        %v366 = vlaneseq
        %v367 = vshrl.u32 %v366, 7
        %v368 = vsub.s32 0, %v367
        %v369 = vrot.slane %v364, %v368
        %v370 = vlaneseq
        %v371 = vshrl.u32 %v370, 7
        %v372 = vsub.s32 1, %v371
        %v373 = vrot.slane %v364, %v372
        %v378 = vunpack.c.l.s4 1983009808
        %v379 = vunpack.c.0.s8 %v378
        %v380 = vlaneseq
        %v381 = vshrl.u32 %v380, 7
        %v382 = vsub.s32 %v379, %v381
        %v383 = vrot.slane %v299, %v382
        %v384 = vcombine.high %v383, %v383
        %387 = vmatprep.subr.mxu0 %v301
        %388 = vmatpush1.msra.mxu0 %v300
        %389 = vmatprep.subr.mxu0 %v303
        %390 = vmatpush1.msra.mxu0 %v302
        %391 = vmatprep.subr.mxu0 %v305
        %392 = vmatpush1.msra.mxu0 %v304
        %393 = vmatprep.subr.mxu0 %v307
        %394 = vmatpush1.msra.mxu0 %v306
        %395 = vmatprep.subr.mxu0 %v309
        %396 = vmatpush1.msra.mxu0 %v308
        %397 = vmatprep.subr.mxu0 %v311
        %398 = vmatpush1.msra.mxu0 %v310
        %399 = vmatprep.subr.mxu0 %v313
        %400 = vmatpush1.msra.mxu0 %v312
        %401 = vmatprep.subr.mxu0 %v315
        %402 = vmatpush1.msra.mxu0 %v314
        %403 = vmatprep.subr.mxu0 %v317
        %404 = vmatpush1.msra.mxu0 %v316
        %405 = vmatprep.subr.mxu0 %v319
        %406 = vmatpush1.msra.mxu0 %v318
        %407 = vmatprep.subr.mxu0 %v321
        %408 = vmatpush1.msra.mxu0 %v320
        %409 = vmatprep.subr.mxu0 %v323
        %410 = vmatpush1.msra.mxu0 %v322
        %411 = vmatprep.subr.mxu0 %v325
        %412 = vmatpush1.msra.mxu0 %v324
        %413 = vmatprep.subr.mxu0 %v327
        %414 = vmatpush1.msra.mxu0 %v326
        %415 = vmatprep.subr.mxu0 %v329
        %416 = vmatpush1.msra.mxu0 %v328
        %417 = vmatprep.subr.mxu0 %v331
        %418 = vmatpush1.msra.mxu0 %v330
        %419 = vmatprep.subr.mxu0 %v333
        %420 = vmatpush1.msra.mxu0 %v332
        %421 = vmatprep.subr.mxu0 %v335
        %422 = vmatpush1.msra.mxu0 %v334
        %423 = vmatprep.subr.mxu0 %v337
        %424 = vmatpush1.msra.mxu0 %v336
        %425 = vmatprep.subr.mxu0 %v339
        %426 = vmatpush1.msra.mxu0 %v338
        %427 = vmatprep.subr.mxu0 %v341
        %428 = vmatpush1.msra.mxu0 %v340
        %429 = vmatprep.subr.mxu0 %v343
        %430 = vmatpush1.msra.mxu0 %v342
        %431 = vmatprep.subr.mxu0 %v345
        %432 = vmatpush1.msra.mxu0 %v344
        %433 = vmatprep.subr.mxu0 %v347
        %434 = vmatpush1.msra.mxu0 %v346
        %435 = vmatprep.subr.mxu0 %v349
        %436 = vmatpush1.msra.mxu0 %v348
        %437 = vmatprep.subr.mxu0 %v351
        %438 = vmatpush1.msra.mxu0 %v350
        %439 = vmatprep.subr.mxu0 %v353
        %440 = vmatpush1.msra.mxu0 %v352
        %441 = vmatprep.subr.mxu0 %v355
        %442 = vmatpush1.msra.mxu0 %v354
        %443 = vmatprep.subr.mxu0 %v357
        %444 = vmatpush1.msra.mxu0 %v356
        %445 = vmatprep.subr.mxu0 %v359
        %446 = vmatpush1.msra.mxu0 %v358
        %447 = vmatprep.subr.mxu0 %v361
        %448 = vmatpush1.msra.mxu0 %v360
        %449 = vmatprep.subr.mxu0 %v363
        %450 = vmatpush1.msra.mxu0 %v362
        %451 = vmatprep.mubr.f32.mxu0 %v384
        %452 = vmatmul.mubr.f32.gmra.mrb[0].mxu0 %v383
        %v453 = vpop.f32.mrb[0].mxu0
        %v454 = vadd.f32 %v369, %v453
        %v455 = vpop.f32.mrb[0].mxu0
        %v456 = vadd.f32 %v373, %v455
        %457 = vdwg.mxu0
        %v458 = vld [vmem:[%s3] sm:$0x1]
        %v460 = vlaneseq
        %v461 = vshrl.u32 %v460, 7
        %v462 = vsub.s32 0, %v461
        %v463 = vrot.slane %v458, %v462
        %v465 = vld [vmem:[%s4] sm:$0x1]
        %v467 = vlaneseq
        %v468 = vshrl.u32 %v467, 7
        %v469 = vsub.s32 0, %v468
        %v470 = vrot.slane %v465, %v469
        %vm472 = vcmask 1041408
        %v473 = vsel %vm472, %v454, 0.0
        %474 = vadd.xlane.f32.xlu0 %v473
        %v475 = vpop.xlane.xlu0 %474
        %v476 = vrcp.pop 128.0
        %v477 = vmul.f32 %v475, %v476
        %v478 = vsub.f32 %v454, %v477
        %v479 = vmul.f32 %v478, %v478
        %v480 = vsel %vm472, %v479, 0.0
        %481 = vadd.xlane.f32.xlu0 %v480
        %v482 = vpop.xlane.xlu0 %481
        %v483 = vmul.f32 %v482, %v476
        %v484 = vadd.f32 %v483, 1e-05
        %v485 = vrsqrt.pop %v484
        %v486 = vmul.f32 %v478, %v485
        %v487 = vmul.f32 %v486, %v463
        %v488 = vadd.f32 %v487, %v470
        %489 = vst [vmem:[%s291] sm:$0x3] %v488
        %v490 = vsel %vm472, %v456, 0.0
        %491 = vadd.xlane.f32.xlu0 %v490
        %v492 = vpop.xlane.xlu0 %491
        %v493 = vmul.f32 %v492, %v476
        %v494 = vsub.f32 %v456, %v493
        %v495 = vmul.f32 %v494, %v494
        %v496 = vsel %vm472, %v495, 0.0
        %497 = vadd.xlane.f32.xlu0 %v496
        %v498 = vpop.xlane.xlu0 %497
        %v499 = vmul.f32 %v498, %v476
        %v500 = vadd.f32 %v499, 1e-05
        %v501 = vrsqrt.pop %v500
        %v502 = vmul.f32 %v494, %v501
        %v503 = vmul.f32 %v502, %v463
        %v504 = vadd.f32 %v503, %v470
        %505 = vst [vmem:[%s291 + $0x2] sm:$0x3] %v504
        %s506 = sand.u32 %s165, 1
        %s507 = scalar_lea.sflag [#allocation4], %s506
        %s508 = sand.u32 %s165, 1
        %s509 = smul.addr %s508, 4
        %s510 = scalar_lea.vmem [#allocation7], %s509
        // Predicated region
        $region49: #{tpu_custom_call.1} parent=39 // pred_check
          %p511 = pneg %p175
        $region50: #{tpu_custom_call.1} parent=39 // pred_check_branch
          %513 = sbr.rel (%p511) target = $region52
        $region51: #{tpu_custom_call.1} parent=39 // pred_region
          %s514 = smul.u32 2, %s27
          %s516 = ssub.s32 64, 64
          %517 = vsyncadd %s507, %s516
          %s518 = smul.addr %s28, 4
          %s519 = sadd.s32 %s514, %s518
          %s520 = smul.addr %s519, 32
          %s521 = scalar_lea.hbm %s5, %s520
          %s523 = sshll.u32 %s510, 4
          %s524 = int_to_ptr.vmem [resolvable:$true] %s523
          %526 = dma.vmem_to_hbm [thread:$0]  %s524, 64, %s521, %s507
        $region52: #{tpu_custom_call.1} parent=39 // pred_fallthru
          _
      $region40: #{tpu_custom_call.1} parent=5 // pred_fallthru
        _
      %p527 = scmp.le.s32.totalorder 2, %s18
      // Predicated region
      $region53: #{tpu_custom_call.1} parent=5 // pred_check
        %p528 = pneg %p527
      $region54: #{tpu_custom_call.1} parent=5 // pred_check_branch
        %530 = sbr.rel (%p528) target = $region56
      $region55: #{tpu_custom_call.1} parent=5 // pred_region
        %s531 = ssub.s32 %s18, 2
        // Predicated region
        $region57: #{tpu_custom_call.1} parent=55 // pred_check
          %p532 = pneg %p181
        $region58: #{tpu_custom_call.1} parent=55 // pred_check_branch
          %534 = sbr.rel (%p532) target = $region60
        $region59: #{tpu_custom_call.1} parent=55 // pred_region
          %s535 = sand.u32 %s166, 1
          %s536 = scalar_lea.sflag [#allocation4], %s535
          %s537 = sand.u32 %s166, 1
          %s538 = smul.addr %s537, 4
          %s539 = scalar_lea.vmem [#allocation7], %s538
          %540 = dma.done %s536, 64
        $region60: #{tpu_custom_call.1} parent=55 // pred_fallthru
          _
      $region56: #{tpu_custom_call.1} parent=5 // pred_fallthru
        _
    $region6: #{tpu_custom_call.1} parent=1 // loop_footer
      %s22 = sadd.s32 1, %s18
    $region7: #{tpu_custom_call.1} parent=1 // loop_footer_branch
      %17 = sbr.rel target = $region3
    $region8: #{tpu_custom_call.1} parent=1 // loop_exit
      _
    %541 = vsyncpa [#allocation3], 1
    %s542 = scalar_lea.sflag [#allocation3], 1
    %543 = vsyncpa %s542, 1
    %544 = vsyncpa [#allocation6], 1
    %s545 = scalar_lea.sflag [#allocation6], 1
    %546 = vsyncpa %s545, 1
    %547 = vsyncpa [#allocation4], 1
    %s548 = scalar_lea.sflag [#allocation4], 1
    %549 = vsyncpa %s548, 1

</llo_original>
